<compile_context>
chip_gen: v7x
topology: tpu7x:2x2x1
jax: 0.10.0
libtpu: 0.0.40
codegen_flags: <defaults>
</compile_context>

<pallas_src>
import numpy as np
import jax
import jax.numpy as jnp
from jax.experimental import pallas as pl
from jax.experimental.pallas import tpu as pltpu


# ----------------------------- parameter glue (plain numpy/JAX) -----------------------------

def compute_theta_from_local_k(decay_type, local_k, decay_clip):
    local_k = np.float32(local_k)
    decay_clip = np.float32(decay_clip)
    if decay_type == "Gaussian":
        return float(np.sqrt(local_k ** 2 / (-2.0 * np.log(decay_clip))))
    elif decay_type == "Exponential":
        return float(-np.log(decay_clip) / local_k)
    elif decay_type == "InverseQuadratic":
        return float(local_k / np.sqrt((1.0 - decay_clip) / decay_clip))
    else:
        raise ValueError("Invalid decay type.")


# ----------------------------- Pallas kernel -----------------------------

def _make_decay_kernel(decay_type, decay_clip, use_approx_recip):
    """decay_type / decay_clip / use_approx_recip are static (baked into the kernel)."""

    def kernel(dist_ref, coeff_ref, out_ref):
        # dist_ref : VMEM (1, 1, TJ) f32   -- one lane-dense tile of the distance matrix
        # coeff_ref: VMEM (H, 1)    f32   -- per-head precomputed coefficient (resident)
        # out_ref  : VMEM (1, H, TJ)      -- all H heads for this tile
        d = dist_ref[0]          # (1, TJ)  f32
        c = coeff_ref[...]       # (H, 1)   f32
        if decay_type == "Gaussian":
            # c = -1 / (2 * theta^2)  ->  exp(d^2 * c)
            dec = jnp.exp((d * d) * c)                        # (H, TJ)
        elif decay_type == "Exponential":
            # c = -theta              ->  exp(d * c)
            dec = jnp.exp(d * c)                              # (H, TJ)
        elif decay_type == "InverseQuadratic":
            # c = 1 / theta^2         ->  1 / (1 + d^2 * c)
            q = 1.0 + (d * d) * c                             # (H, TJ)
            if use_approx_recip:
                dec = pl.reciprocal(q, approx=True)           # EUP slot, ~free
            else:
                dec = 1.0 / q
        else:
            raise ValueError(f"Unknown DECAY_TYPE: {decay_type}")
        if decay_clip is not None:
            dec = jnp.where(dec < decay_clip, jnp.zeros_like(dec), dec)
        out_ref[0] = dec.astype(out_ref.dtype)               # (H, TJ) write, lane-dense

    return kernel


def _choose_lane_tile(M, H, budget_bytes=16 * 1024 * 1024):
    """Pick a lane-tile size TJ (multiple of 128) so double-buffered input + H-fused
    double-buffered output + elementwise intermediates stay well inside scoped VMEM."""
    # per lane column (f32, worst case): 2 input bufs + (2 output bufs + ~3 temps) per head
    bytes_per_lane = 4 * (2 + 5 * H)
    tj = budget_bytes // bytes_per_lane
    tj = max(128, (tj // 128) * 128)
    m128 = ((M + 127) // 128) * 128          # problem size padded to full lanes
    return min(tj, m128)


def spatial_decay_pallas(distance, theta, decay_type, decay_clip=None,
                         out_dtype=jnp.float32, use_approx_recip=False):
    """distance: [B, N, N] f32, theta: [H] f32 -> decays: [B, H, N, N] out_dtype."""
    distance = distance.astype(jnp.float32)
    theta = theta.astype(jnp.float32)
    B, N, N2 = distance.shape
    assert N == N2, "distance must be square per batch"
    H = theta.shape[0]
    M = N * N

    # --- per-head coefficient (tiny, plain JAX; guards theta -> 0 divide-by-zero) ---
    theta_safe = jnp.maximum(jnp.abs(theta), 1e-6)
    if decay_type == "Gaussian":
        coeff = -1.0 / (2.0 * theta_safe * theta_safe)
    elif decay_type == "Exponential":
        coeff = -theta
    elif decay_type == "InverseQuadratic":
        coeff = 1.0 / (theta_safe * theta_safe)
    else:
        raise ValueError(f"Unknown DECAY_TYPE: {decay_type}")
    coeff = coeff.reshape(H, 1).astype(jnp.float32)

    # --- lane-dense flatten + pad to a multiple of the lane tile ---
    TJ = _choose_lane_tile(M, H)
    n_tiles = -(-M // TJ)                     # ceil div
    Mp = n_tiles * TJ                         # multiple of TJ (and of 128)
    dist_flat = distance.reshape(B, M)
    if Mp != M:
        dist_flat = jnp.pad(dist_flat, ((0, 0), (0, Mp - M)))
    dist_flat = dist_flat.reshape(B, 1, Mp)

    kernel = _make_decay_kernel(decay_type, decay_clip, use_approx_recip)

    out = pl.pallas_call(
        kernel,
        out_shape=jax.ShapeDtypeStruct((B, H, Mp), out_dtype),
        grid=(B, n_tiles),
        in_specs=[
            pl.BlockSpec((1, 1, TJ), lambda b, t: (b, 0, t)),   # distance tile
            pl.BlockSpec((H, 1), lambda b, t: (0, 0)),          # resident coeff vector
        ],
        out_specs=pl.BlockSpec((1, H, TJ), lambda b, t: (b, 0, t)),
        compiler_params=pltpu.CompilerParams(
            dimension_semantics=("parallel", "parallel"),       # shards over 2 TCs on v7x
            vmem_limit_bytes=32 * 1024 * 1024,                  # safe on v5e/v6e/v7x
        ),
    )(dist_flat, coeff)

    # strip lane padding, restore [B, H, N, N]
    return out[:, :, :M].reshape(B, H, N, N)


# ----------------------------- DecayNetwork module (forward only) -----------------------------

class DecayNetworkPallas:
    """Mirrors DecayNetwork with slide_repr_condition=None (deterministic init)."""

    def __init__(self, decay_type, embed_dim, num_heads,
                 decay_clip=0.1, min_local_k=1, max_local_k=25,
                 out_dtype=jnp.float32):
        self.decay_type = decay_type
        self.decay_clip = decay_clip
        self.min_local_k = min_local_k
        self.max_local_k = max_local_k
        self.out_dtype = out_dtype
        self.magnitude = jnp.ones((1,), jnp.float32)

        self.theta1 = compute_theta_from_local_k(decay_type, min_local_k, decay_clip)
        self.theta2 = compute_theta_from_local_k(decay_type, max_local_k, decay_clip)
        self.theta_min = min(self.theta1, self.theta2)
        self.theta_max = max(self.theta1, self.theta2)

        # init_around_k(target_init_k=7) -- fully deterministic (linspace)
        target_init_k = 7
        lo = compute_theta_from_local_k(decay_type, target_init_k - 1, decay_clip)
        hi = compute_theta_from_local_k(decay_type, target_init_k + 1, decay_clip)
        t_init_min, t_init_max = min(lo, hi), max(lo, hi)
        t_range = t_init_max - t_init_min
        t_init_min += t_range * 0.25
        t_init_max -= t_range * 0.25
        lam_min = (t_init_min - self.theta_min) / (self.theta_max - self.theta_min)
        lam_max = (t_init_max - self.theta_min) / (self.theta_max - self.theta_min)
        self.lambda_p = jnp.linspace(lam_min, lam_max, num_heads, dtype=jnp.float32)

    def reparam(self, lambda_p):
        lambda_p = jnp.clip(lambda_p, 0.0, 1.0)
        return self.theta_min + lambda_p * (self.theta_max - self.theta_min)

    def forward(self, distance, decay_clip=None):
        # slide_repr_condition is None -> lambda_p here is the reparameterized theta
        # TODO(synk): 'MAG'/'Mean-Pool'/'MoransI'/'ABMIL' slide-repr branches and head_ind
        #             selection are not exercised by this synthetic kernel.
        theta = self.reparam(self.lambda_p)                                   # [H]
        decays = spatial_decay_pallas(distance, theta, self.decay_type, decay_clip,
                                      out_dtype=self.out_dtype)
        return decays.astype(jnp.float32), theta


# ----------------------------- pure-JAX reference (for correctness check) -----------------------------

def _reference_decays(distance, theta, decay_type, decay_clip):
    d = distance[:, None, :, :]          # [B, 1, N, N]
    t = theta[None, :, None, None]       # [1, H, 1, 1]
    if decay_type == "Gaussian":
        dec = jnp.exp(-(d ** 2) / (2.0 * t ** 2))
    elif decay_type == "Exponential":
        dec = jnp.exp(-t * d)
    else:
        dec = 1.0 / (1.0 + (d / t) ** 2)
    if decay_clip is not None:
        dec = jnp.where(dec < decay_clip, jnp.zeros_like(dec), dec)
    return dec.astype(jnp.float32)


# ----------------------------- driver -----------------------------

if __name__ == "__main__":
    B, N, H, EMBED_DIM = 2, 16, 4, 32
    DECAY_CLIP_PARAM = 0.1     # decay_clip used to derive theta bounds at __init__
    DECAY_CLIP_FWD = 0.1       # decay_clip argument of forward (thresholding)

    key = jax.random.PRNGKey(0)
    # Build a meaningful pairwise-distance matrix from random 2-D coords.
    coords = jax.random.uniform(key, (B, N, 2), dtype=jnp.float32) * 10.0
    diff = coords[:, :, None, :] - coords[:, None, :, :]
    distance = jnp.sqrt(jnp.sum(diff * diff, axis=-1))          # [B, N, N]

    for decay_type in ("Gaussian", "Exponential", "InverseQuadratic"):
        net = DecayNetworkPallas(decay_type, EMBED_DIM, H, decay_clip=DECAY_CLIP_PARAM)

        # 1) un-clipped numerical check (tight tolerance)
        dec_nc, theta = net.forward(distance, decay_clip=None)
        dec_nc = jax.block_until_ready(dec_nc)
        ref_nc = _reference_decays(distance, theta, decay_type, None)
        assert dec_nc.shape == (B, H, N, N) and dec_nc.dtype == jnp.float32
        assert np.allclose(np.asarray(dec_nc), np.asarray(ref_nc), rtol=1e-5, atol=1e-5), \
            f"Pallas kernel disagrees with reference ({decay_type}, no clip)"

        # 2) clipped check, ignoring elements numerically on the clip boundary
        dec_c, _ = net.forward(distance, decay_clip=DECAY_CLIP_FWD)
        dec_c = jax.block_until_ready(dec_c)
        ref_c = _reference_decays(distance, theta, decay_type, DECAY_CLIP_FWD)
        safe = np.abs(np.asarray(ref_nc) - DECAY_CLIP_FWD) > 1e-4
        assert np.allclose(np.asarray(dec_c)[safe], np.asarray(ref_c)[safe],
                           rtol=1e-5, atol=1e-5), \
            f"Pallas kernel disagrees with reference ({decay_type}, clip)"

    print("KERNEL_OK")
</pallas_src>

<mosaic_0001>
module attributes {stable_mosaic.version = 11 : i64} {
  func.func @kernel(%arg0: i32, %arg1: i32, %arg2: memref<1x1x256xf32, #tpu.memory_space<vmem>>, %arg3: memref<4x1xf32, #tpu.memory_space<vmem>>, %arg4: memref<1x4x256xf32, #tpu.memory_space<vmem>>) attributes {dimension_semantics = [#tpu.dimension_semantics<parallel>, #tpu.dimension_semantics<parallel>], iteration_bounds = array<i64: 2, 1>, scalar_prefetch = 0 : i64, scratch_operands = 0 : i64, tpu.core_type = #tpu.core_type<tc>, window_params = [{transform_indices = @transform_0, window_bounds = array<i64: 1, 1, 256>}, {pipeline_mode = #tpu.pipeline_mode<synchronous>, transform_indices = @transform_1, window_bounds = array<i64: 4, 1>}, {transform_indices = @transform_2, window_bounds = array<i64: 1, 4, 256>}]} {
    %c0 = arith.constant 0 : index
    %c0_0 = arith.constant 0 : index
    %c0_1 = arith.constant 0 : index
    %0 = vector.load %arg2[%c0, %c0_0, %c0_1] : memref<1x1x256xf32, #tpu.memory_space<vmem>>, vector<1x1x256xf32>
    %1 = vector.shape_cast %0 : vector<1x1x256xf32> to vector<1x256xf32>
    %c0_2 = arith.constant 0 : index
    %c0_3 = arith.constant 0 : index
    %2 = vector.load %arg3[%c0_2, %c0_3] : memref<4x1xf32, #tpu.memory_space<vmem>>, vector<4x1xf32>
    %3 = arith.mulf %1, %1 : vector<1x256xf32>
    %4 = vector.broadcast %3 : vector<1x256xf32> to vector<4x256xf32>
    %5 = vector.broadcast %2 : vector<4x1xf32> to vector<4x256xf32>
    %6 = arith.mulf %4, %5 : vector<4x256xf32>
    %7 = math.exp %6 : vector<4x256xf32>
    %c0_4 = arith.constant 0 : index
    %c0_5 = arith.constant 0 : index
    %c0_6 = arith.constant 0 : index
    %8 = vector.load %arg4[%c0_4, %c0_5, %c0_6] : memref<1x4x256xf32, #tpu.memory_space<vmem>>, vector<1x4x256xf32>
    %9 = vector.shape_cast %8 : vector<1x4x256xf32> to vector<4x256xf32>
    %10 = vector.shape_cast %7 : vector<4x256xf32> to vector<1x4x256xf32>
    tpu.vector_store %arg4[%c0_4, %c0_5, %c0_6], %10 {strides = array<i32>} : memref<1x4x256xf32, #tpu.memory_space<vmem>>, vector<1x4x256xf32>,
    return
  }
  func.func @transform_0(%arg0: i32, %arg1: i32) -> (i32, i32, i32) {
    %c0_i32 = arith.constant 0 : i32
    %c0_i32_0 = arith.constant 0 : i32
    return %arg0, %c0_i32, %arg1 : i32, i32, i32
  }
  func.func @transform_1(%arg0: i32, %arg1: i32) -> (i32, i32) {
    %c0_i32 = arith.constant 0 : i32
    %c0_i32_0 = arith.constant 0 : i32
    %c0_i32_1 = arith.constant 0 : i32
    return %c0_i32, %c0_i32_0 : i32, i32
  }
  func.func @transform_2(%arg0: i32, %arg1: i32) -> (i32, i32, i32) {
    %c0_i32 = arith.constant 0 : i32
    %c0_i32_0 = arith.constant 0 : i32
    return %arg0, %c0_i32, %arg1 : i32, i32, i32
  }
}

</mosaic_0001>

<llo_original>
// kernel: tpu_custom_call.1
$region0: #{tpu_custom_call.1}
  #allocation0 [shape = 'u32[]', space=smem, size = 0x4, offset = 0x4, fixed_abs, tag = 'smem constant byte address 0x4 - core index']
  #allocation1 [shape = 'u32[144,128]{1,0:T(1,128)}', space=vmem, size = 0x12000, scoped, tag = 'internal scratch']
  %s0 = inlined_call_operand.vmem [shape: f32[2,1,256], index: 0, kind: input, shape index: {}]
  %s1 = inlined_call_operand.vmem [shape: f32[4,1], index: 1, kind: input, shape index: {}]
  %s2 = inlined_call_operand.hbm [shape: f32[2,4,256], index: 2, kind: output, shape index: {}]
  %s3 = sld [smem:[#allocation0]]
  $region41: #{tpu_custom_call.1} parent=0
    _
  %s5 = ssub.s32 1, %s3
  %s6 = scalar_select 0, %s5, %s3
  $region1: #{tpu_custom_call.1} parent=0
    #allocation2 [shape = 'u8[8192]{0}', space=vmem, size = 0x2000, scoped, tag = 'output window, operand 0']
    #allocation3 [shape = 's32[2]{0}', space=sflag, size = 0x8, scoped, tag = 'scoped memory for tpu_custom_call.1']
    %7 = vsyncpa [#allocation3], 0
    %s8 = scalar_lea.sflag [#allocation3], 1
    %9 = vsyncpa %s8, 0
    loop: start=0, step=1, limit=4
    $region2: #{tpu_custom_call.1} parent=1 // loop_pre_header
      _
    $region3: #{tpu_custom_call.1} parent=1 // loop_header
      %s11 = sphi 0, %s15
      %p12 = scmp.ge.s32.totalorder %s11, 4
      %s18 = sphi 0, %s30
      %s19 = sphi 0, %s26
      %s20 = sphi 0, %s18
      %s21 = sphi 0, %s19
      %s22 = sphi 0, %s20
      %s23 = sphi 0, %s21
      %s35 = sphi 0, %s37
      %s38 = sphi 0, %s35
      %s39 = sphi 0, %s38
      %s55 = sphi 0, %s39
      %s59 = sphi 0, %s59
      %s61 = sphi 0, %s59
      %s62 = sphi 0, %s61
      %s76 = sphi 0, %s62
      %s84 = sphi 0, %s86
      %s87 = sphi 0, %s84
      %s88 = sphi 0, %s87
      %s104 = sphi 0, %s88
    $region4: #{tpu_custom_call.1} parent=1 // loop_header_branch
      %14 = sbr.rel (%p12) target = $region8
    $region5: #{tpu_custom_call.1} parent=1 // loop_body
      %s16 = ssub.s32 %s11, 1
      %s17 = ssub.s32 %s11, 2
      %s24 = sadd.s32 1, %s19
      %p25 = scmp.ge.s32.totalorder %s24, 1
      %s26 = scalar_select %p25, 0, %s24
      %s27 = sadd.s32 1, %s18
      %s28 = scalar_select %p25, %s27, %s18
      %p29 = scmp.ge.s32.totalorder %s28, 2
      %s30 = scalar_select %p29, 0, %s28
      %s31 = ssub.s32 %s18, %s30
      %s32 = ssub.s32 %s19, %s26
      %s33 = sor.u32 %s31, %s32
      %p34 = scmp.eq.s32.totalorder %s33, 0
      %s36 = sadd.s32 %s35, 1
      %s37 = scalar_select %p34, %s35, %s36
      %p40 = pneg %p34
      %p41 = scmp.eq.s32.totalorder %s11, 1
      %p42 = por %p40, %p41
      %p43 = scmp.ne.s32.totalorder %s35, %s38
      %p44 = scmp.eq.s32.totalorder %s11, 0
      %p45 = por %p43, %p44
      %p46 = scmp.ne.s32.totalorder %s35, %s38
      %p47 = scmp.eq.s32.totalorder %s16, 1
      %p48 = por %p46, %p47
      %p49 = scmp.ne.s32.totalorder %s38, %s39
      %p50 = scmp.eq.s32.totalorder %s16, 0
      %p51 = por %p49, %p50
      %p52 = scmp.ne.s32.totalorder %s38, %s39
      %p53 = scmp.eq.s32.totalorder %s17, 1
      %p54 = por %p52, %p53
      %p56 = scmp.ne.s32.totalorder %s39, %s55
      %p57 = scmp.eq.s32.totalorder %s17, 0
      %p58 = por %p56, %p57
      %s60 = sadd.s32 %s59, 1
      %p63 = scmp.eq.s32.totalorder %s11, 1
      %p64 = scmp.ne.s32.totalorder %s59, %s61
      %p65 = scmp.eq.s32.totalorder %s11, 0
      %p66 = por %p64, %p65
      %p67 = scmp.ne.s32.totalorder %s59, %s61
      %p68 = scmp.eq.s32.totalorder %s16, 1
      %p69 = por %p67, %p68
      %p70 = scmp.ne.s32.totalorder %s61, %s62
      %p71 = scmp.eq.s32.totalorder %s16, 0
      %p72 = por %p70, %p71
      %p73 = scmp.ne.s32.totalorder %s61, %s62
      %p74 = scmp.eq.s32.totalorder %s17, 1
      %p75 = por %p73, %p74
      %p77 = scmp.ne.s32.totalorder %s62, %s76
      %p78 = scmp.eq.s32.totalorder %s17, 0
      %p79 = por %p77, %p78
      %s80 = ssub.s32 %s18, %s30
      %s81 = ssub.s32 %s19, %s26
      %s82 = sor.u32 %s80, %s81
      %p83 = scmp.eq.s32.totalorder %s82, 0
      %s85 = sadd.s32 %s84, 1
      %s86 = scalar_select %p83, %s84, %s85
      %p89 = pneg %p83
      %p90 = scmp.eq.s32.totalorder %s11, 1
      %p91 = por %p89, %p90
      %p92 = scmp.ne.s32.totalorder %s84, %s87
      %p93 = scmp.eq.s32.totalorder %s11, 0
      %p94 = por %p92, %p93
      %p95 = scmp.ne.s32.totalorder %s84, %s87
      %p96 = scmp.eq.s32.totalorder %s16, 1
      %p97 = por %p95, %p96
      %p98 = scmp.ne.s32.totalorder %s87, %s88
      %p99 = scmp.eq.s32.totalorder %s16, 0
      %p100 = por %p98, %p99
      %p101 = scmp.ne.s32.totalorder %s87, %s88
      %p102 = scmp.eq.s32.totalorder %s17, 1
      %p103 = por %p101, %p102
      %p105 = scmp.ne.s32.totalorder %s88, %s104
      %p106 = scmp.eq.s32.totalorder %s17, 0
      %p107 = por %p105, %p106
      %p108 = scmp.le.s32.totalorder 1, %s11
      %p109 = scmp.lt.s32.totalorder %s11, 3
      %p110 = pnand %p108, %p109
      %p111 = pneg %p110
      // Predicated region
      $region9: #{tpu_custom_call.1} parent=5 // pred_check
        _
      $region10: #{tpu_custom_call.1} parent=5 // pred_check_branch
        %113 = sbr.rel (%p110) target = $region12
      $region11: #{tpu_custom_call.1} parent=5 // pred_region
        %s114 = ssub.s32 %s11, 1
        // Predicated region
        $region13: #{tpu_custom_call.1} parent=11 // pred_check
          %p115 = pneg %p72
        $region14: #{tpu_custom_call.1} parent=11 // pred_check_branch
          %117 = sbr.rel (%p115) target = $region16
        $region15: #{tpu_custom_call.1} parent=11 // pred_region
          _
        $region16: #{tpu_custom_call.1} parent=11 // pred_fallthru
          _
      $region12: #{tpu_custom_call.1} parent=5 // pred_fallthru
        _
      %p118 = scmp.lt.s32.totalorder %s11, 2
      // Predicated region
      $region17: #{tpu_custom_call.1} parent=5 // pred_check
        %p119 = pneg %p118
      $region18: #{tpu_custom_call.1} parent=5 // pred_check_branch
        %121 = sbr.rel (%p119) target = $region20
      $region19: #{tpu_custom_call.1} parent=5 // pred_region
        // Predicated region
        $region21: #{tpu_custom_call.1} parent=19 // pred_check
          %p122 = pneg %p45
        $region22: #{tpu_custom_call.1} parent=19 // pred_check_branch
          %124 = sbr.rel (%p122) target = $region24
        $region23: #{tpu_custom_call.1} parent=19 // pred_region
          %s125 = smul.u32 2, %s19
          %p126 = scmp.lt.s32.totalorder %s18, 1
          %s127 = scalar_select %p126, %s18, 1
          %p128 = scmp.lt.s32.totalorder %s125, 1
          %s129 = scalar_select %p128, %s125, 1
          %s130 = smul.addr %s127, 2
          %s131 = sadd.s32 %s129, %s130
          %s132 = scalar_lea.vmem %s0, %s131
          %s133 = smul.u32 2, %s19
        $region24: #{tpu_custom_call.1} parent=19 // pred_fallthru
          _
      $region20: #{tpu_custom_call.1} parent=5 // pred_fallthru
        _
      %p134 = scmp.le.s32.totalorder 1, %s11
      %p135 = scmp.lt.s32.totalorder %s11, 3
      %p136 = pnand %p134, %p135
      %p137 = pneg %p136
      // Predicated region
      $region25: #{tpu_custom_call.1} parent=5 // pred_check
        _
      $region26: #{tpu_custom_call.1} parent=5 // pred_check_branch
        %139 = sbr.rel (%p136) target = $region28
      $region27: #{tpu_custom_call.1} parent=5 // pred_region
        %s140 = ssub.s32 %s11, 1
        %s141 = smul.u32 2, %s21
        %p142 = scmp.lt.s32.totalorder %s20, 1
        %s143 = scalar_select %p142, %s20, 1
        %p144 = scmp.lt.s32.totalorder %s141, 1
        %s145 = scalar_select %p144, %s141, 1
        %s146 = smul.addr %s143, 2
        %s147 = sadd.s32 %s145, %s146
        %s148 = scalar_lea.vmem %s0, %s147
        %p149 = pneg %p51
        %p150 = pneg %p48
        %p151 = pneg %p72
        %p152 = pneg %p69
        %p153 = pneg %p100
        %p154 = pneg %p97
        %s155 = sand.u32 %s87, 1
        %s156 = scalar_lea.sflag [#allocation3], %s155
        %s157 = sand.u32 %s87, 1
        %s158 = smul.addr %s157, 8
        %s159 = scalar_lea.vmem [#allocation2], %s158
        %s160 = smul.u32 2, %s21
        %p161 = scmp.lt.s32.totalorder %s20, 1
        %s162 = scalar_select %p161, %s20, 1
        %p163 = scmp.lt.s32.totalorder %s160, 1
        %s164 = scalar_select %p163, %s160, 1
        %s165 = smul.addr %s162, 2
        %s166 = sadd.s32 %s164, %s165
        %s167 = scalar_lea.vmem %s0, %s166
        %s168 = smul.u32 2, %s21
        %s169 = smul.u32 2, %s21
        %v170 = vld [vmem:[%s167] sm:$0x3]
        %v171 = vld [vmem:[%s1] sm:$0xf]
        %v172 = vmul.f32 %v170, %v170
        %v174 = vlaneseq
        %v175 = vshrl.u32 %v174, 7
        %v176 = vsub.s32 0, %v175
        %v177 = vrot.slane %v172, %v176
        %v178 = vlaneseq
        %v179 = vshrl.u32 %v178, 7
        %v180 = vsub.s32 1, %v179
        %v181 = vrot.slane %v172, %v180
        %185 = vset.pattern.permute.xlu0 0
        %186 = vperm.xlu0 %185, %v171
        %v187 = vpop.permute.xlu0 %186
        %v189 = vmul.f32 %v177, %v187
        %v190 = vmul.f32 %v181, %v187
        %v191 = vmul.f32 %v189, 1.442695
        %v192 = vpow.pop %v191
        %v193 = vmul.f32 %v190, 1.442695
        %v194 = vpow.pop %v193
        %v197 = vcombine.low %v192, %v194
        %199 = vst [vmem:[%s159] sm:$0xff] %v197
        %s200 = sand.u32 %s87, 1
        %s201 = scalar_lea.sflag [#allocation3], %s200
        %s202 = sand.u32 %s87, 1
        %s203 = smul.addr %s202, 8
        %s204 = scalar_lea.vmem [#allocation2], %s203
        // Predicated region
        $region29: #{tpu_custom_call.1} parent=27 // pred_check
          %p205 = pneg %p97
        $region30: #{tpu_custom_call.1} parent=27 // pred_check_branch
          %207 = sbr.rel (%p205) target = $region32
        $region31: #{tpu_custom_call.1} parent=27 // pred_region
          %s208 = smul.u32 2, %s21
          %s210 = ssub.s32 128, 128
          %211 = vsyncadd %s201, %s210
          %s212 = smul.addr %s20, 2
          %s213 = sadd.s32 %s208, %s212
          %s214 = smul.addr %s213, 64
          %s215 = scalar_lea.hbm %s2, %s214
          %s217 = sshll.u32 %s204, 4
          %s218 = int_to_ptr.vmem [resolvable:$true] %s217
          %220 = dma.vmem_to_hbm [thread:$0]  %s218, 128, %s215, %s201
        $region32: #{tpu_custom_call.1} parent=27 // pred_fallthru
          _
      $region28: #{tpu_custom_call.1} parent=5 // pred_fallthru
        _
      %p221 = scmp.le.s32.totalorder 2, %s11
      // Predicated region
      $region33: #{tpu_custom_call.1} parent=5 // pred_check
        %p222 = pneg %p221
      $region34: #{tpu_custom_call.1} parent=5 // pred_check_branch
        %224 = sbr.rel (%p222) target = $region36
      $region35: #{tpu_custom_call.1} parent=5 // pred_region
        %s225 = ssub.s32 %s11, 2
        // Predicated region
        $region37: #{tpu_custom_call.1} parent=35 // pred_check
          %p226 = pneg %p103
        $region38: #{tpu_custom_call.1} parent=35 // pred_check_branch
          %228 = sbr.rel (%p226) target = $region40
        $region39: #{tpu_custom_call.1} parent=35 // pred_region
          %s229 = sand.u32 %s88, 1
          %s230 = scalar_lea.sflag [#allocation3], %s229
          %s231 = sand.u32 %s88, 1
          %s232 = smul.addr %s231, 8
          %s233 = scalar_lea.vmem [#allocation2], %s232
          %234 = dma.done %s230, 128
        $region40: #{tpu_custom_call.1} parent=35 // pred_fallthru
          _
      $region36: #{tpu_custom_call.1} parent=5 // pred_fallthru
        _
    $region6: #{tpu_custom_call.1} parent=1 // loop_footer
      %s15 = sadd.s32 1, %s11
    $region7: #{tpu_custom_call.1} parent=1 // loop_footer_branch
      %10 = sbr.rel target = $region3
    $region8: #{tpu_custom_call.1} parent=1 // loop_exit
      _
    %235 = vsyncpa [#allocation3], 1
    %s236 = scalar_lea.sflag [#allocation3], 1
    %237 = vsyncpa %s236, 1

</llo_original>
